<compile_context>
chip_gen: v6e
topology: v6e:2x2x1
jax: 0.10.0
libtpu: 0.0.40
codegen_flags: <defaults>
</compile_context>

<pallas_src>
import math

import jax
import jax.numpy as jnp
from jax.experimental import pallas as pl
from jax.experimental.pallas import tpu as pltpu


# ---------------------------------------------------------------------------
# Hardware-aware helpers
# ---------------------------------------------------------------------------

def _vmem_capacity_bytes() -> int:
    try:
        return int(pltpu.get_tpu_info().vmem_capacity_bytes)
    except Exception:
        return 128 * 1024 * 1024          # v5e/v6e; v7x has 64 MiB


def _compiler_params(dimension_semantics):
    vmem = _vmem_capacity_bytes()
    return pltpu.CompilerParams(
        dimension_semantics=dimension_semantics,
        vmem_limit_bytes=min((vmem * 3) // 4, 96 * 1024 * 1024),
    )


def _pick_tile(dim: int, cap: int) -> int:
    """Largest divisor of `dim` that is <= cap, preferring 128-/8-aligned."""
    if dim <= cap:
        return dim
    for align in (128, 8, 1):
        t = (cap // align) * align
        while t >= align:
            if dim % t == 0:
                return t
            t -= align
    return dim


def _pick_head_group(num_heads: int, head_dim: int, target: int = 256) -> int:
    """Largest divisor G of num_heads with G*head_dim <= target (MXU width)."""
    for g in range(num_heads, 0, -1):
        if num_heads % g == 0 and g * head_dim <= target:
            return g
    return 1


# ---------------------------------------------------------------------------
# Kernel 1: generic linear  y = x @ W + b   (W already [K, N], bias f32)
# ---------------------------------------------------------------------------

def _linear_kernel(x_ref, w_ref, b_ref, o_ref):
    acc = jnp.dot(x_ref[...], w_ref[...], preferred_element_type=jnp.float32)
    o_ref[...] = (acc + b_ref[...]).astype(o_ref.dtype)


def _linear(x, w_t, b, *, out_dtype, row_cap, col_cap=512):
    M, K = x.shape
    N = w_t.shape[1]
    tm = _pick_tile(M, row_cap)
    tn = _pick_tile(N, col_cap)
    b2 = b.reshape(1, N).astype(jnp.float32)
    return pl.pallas_call(
        _linear_kernel,
        out_shape=jax.ShapeDtypeStruct((M, N), out_dtype),
        grid_spec=pltpu.PrefetchScalarGridSpec(
            num_scalar_prefetch=0,
            grid=(M // tm, N // tn),
            in_specs=[
                pl.BlockSpec((tm, K), lambda i, j: (i, 0)),
                pl.BlockSpec((K, tn), lambda i, j: (0, j)),   # fetched once per N tile
                pl.BlockSpec((1, tn), lambda i, j: (0, j)),
            ],
            out_specs=pl.BlockSpec((tm, tn), lambda i, j: (i, j)),
        ),
        compiler_params=_compiler_params(("parallel", "parallel")),
    )(x, w_t, b2)


# ---------------------------------------------------------------------------
# Kernel 2: attention core (per batch, per head-group, per q-tile)
# ---------------------------------------------------------------------------

def _make_attention_kernel(compute_dtype):
    cd = compute_dtype

    def kernel(q_ref, k_ref, v_ref, attn_ref, ctx_ref):
        q = q_ref[0]                                   # (G, tq, hd)
        k = k_ref[0]                                   # (G, Lk, hd)
        v = v_ref[0]                                   # (G, Lk, hd)

        # scores (1/sqrt(hd) already folded into the query projection); f32 acc.
        s = jnp.einsum("gqd,gkd->gqk", q, k,
                       preferred_element_type=jnp.float32)        # (G, tq, Lk)

        # Numerically-stable softmax, fused chain, EXACT normalization
        # (these probabilities are a kernel output).
        s = jnp.exp(s - jnp.max(s, axis=-1, keepdims=True))
        p = s / jnp.sum(s, axis=-1, keepdims=True)

        attn_ref[0] = p.astype(attn_ref.dtype)          # lane-dense (G,tq,Lk) store

        ctx = jnp.einsum("gqk,gkd->gqd", p.astype(cd), v,
                         preferred_element_type=jnp.float32)      # (G, tq, hd)
        ctx_ref[0] = ctx.astype(ctx_ref.dtype)

    return kernel


# ---------------------------------------------------------------------------
# Wrapper: full MultiHeadAttention forward
# ---------------------------------------------------------------------------

def multi_head_attention(query, key, value, params, *, num_heads,
                         compute_dtype=jnp.float32, attn_dtype=jnp.float32):
    """query/key/value: [B, L, D]. Returns (out [B,Lq,D], attn [B,H,Lq,Lk])."""
    B, Lq, D = query.shape
    _, Lk, _ = key.shape
    _, Lv, _ = value.shape
    assert Lv == Lk
    hd = D // num_heads
    assert hd * num_heads == D
    scale = 1.0 / math.sqrt(hd)

    wq, bq, wk, bk, wv, bv, wo, bo = params
    cd = compute_dtype

    # --- one-time host-side weight rearrangement (no in-kernel transposes) ---
    # PyTorch Linear: y = x @ W.T + b with W:[D_out, D_in].  Fold softmax scale
    # into Wq/bq; pre-cast matmul operands to compute_dtype (biases stay f32).
    wq_t = (wq * scale).T.astype(cd)
    wk_t = wk.T.astype(cd)
    wv_t = wv.T.astype(cd)
    wo_t = wo.T.astype(cd)
    bq_s = (bq * scale).astype(jnp.float32)

    qf = query.reshape(B * Lq, D).astype(cd)
    kf = key.reshape(B * Lk, D).astype(cd)
    vf = value.reshape(B * Lk, D).astype(cd)

    vmem = _vmem_capacity_bytes()
    row_cap = 512 if vmem > (64 << 20) else 256        # v7x (64 MiB) -> 256

    # --- 1) hoisted Q/K/V projections: one full-D-wide matmul per tensor ----
    q_p = _linear(qf, wq_t, bq_s, out_dtype=cd, row_cap=row_cap)
    k_p = _linear(kf, wk_t, bk.astype(jnp.float32), out_dtype=cd, row_cap=row_cap)
    v_p = _linear(vf, wv_t, bv.astype(jnp.float32), out_dtype=cd, row_cap=row_cap)

    # Layout plumbing only (mirrors torch .view(B,L,H,hd).transpose(1,2)).
    q_h = q_p.reshape(B, Lq, num_heads, hd).transpose(0, 2, 1, 3)   # [B,H,Lq,hd]
    k_h = k_p.reshape(B, Lk, num_heads, hd).transpose(0, 2, 1, 3)
    v_h = v_p.reshape(B, Lk, num_heads, hd).transpose(0, 2, 1, 3)

    # --- 2) attention kernel: grid (batch, head-group, q-tile), all parallel -
    G = _pick_head_group(num_heads, hd, target=256)
    Hg = num_heads // G
    tq = _pick_tile(Lq, row_cap)
    nq = Lq // tq

    attn, ctx_h = pl.pallas_call(
        _make_attention_kernel(cd),
        out_shape=(
            jax.ShapeDtypeStruct((B, num_heads, Lq, Lk), attn_dtype),
            jax.ShapeDtypeStruct((B, num_heads, Lq, hd), cd),
        ),
        grid_spec=pltpu.PrefetchScalarGridSpec(
            num_scalar_prefetch=0,
            grid=(B, Hg, nq),
            in_specs=[
                pl.BlockSpec((1, G, tq, hd), lambda b, hg, qi: (b, hg, qi, 0)),
                pl.BlockSpec((1, G, Lk, hd), lambda b, hg, qi: (b, hg, 0, 0)),
                pl.BlockSpec((1, G, Lk, hd), lambda b, hg, qi: (b, hg, 0, 0)),
            ],
            out_specs=[
                pl.BlockSpec((1, G, tq, Lk), lambda b, hg, qi: (b, hg, qi, 0)),
                pl.BlockSpec((1, G, tq, hd), lambda b, hg, qi: (b, hg, qi, 0)),
            ],
        ),
        compiler_params=_compiler_params(("parallel", "parallel", "parallel")),
    )(q_h, k_h, v_h)

    # --- 3) concat heads + out_proj as one full D x D Pallas matmul ----------
    ctx = ctx_h.transpose(0, 2, 1, 3).reshape(B * Lq, D)   # layout plumbing
    out = _linear(ctx, wo_t, bo.astype(jnp.float32), out_dtype=jnp.float32,
                  row_cap=row_cap)
    return out.reshape(B, Lq, D), attn


# ---------------------------------------------------------------------------
# Demo / self-check
# ---------------------------------------------------------------------------

def _init_linear(key, d_out, d_in):
    kw, kb = jax.random.split(key)
    bound = 1.0 / math.sqrt(d_in)
    w = jax.random.uniform(kw, (d_out, d_in), jnp.float32, -bound, bound)
    b = jax.random.uniform(kb, (d_out,), jnp.float32, -bound, bound)
    return w, b


def _reference(query, key, value, params, num_heads):
    wq, bq, wk, bk, wv, bv, wo, bo = params
    B, Lq, D = query.shape
    Lk = key.shape[1]
    hd = D // num_heads
    q = (query @ wq.T + bq).reshape(B, Lq, num_heads, hd).transpose(0, 2, 1, 3)
    k = (key @ wk.T + bk).reshape(B, Lk, num_heads, hd).transpose(0, 2, 1, 3)
    v = (value @ wv.T + bv).reshape(B, Lk, num_heads, hd).transpose(0, 2, 1, 3)
    scores = jnp.einsum("bhld,bhmd->bhlm", q, k) / math.sqrt(hd)
    attn = jax.nn.softmax(scores, axis=-1)
    ctx = jnp.einsum("bhlm,bhmd->bhld", attn, v)
    ctx = ctx.transpose(0, 2, 1, 3).reshape(B, Lq, D)
    return ctx @ wo.T + bo, attn


if __name__ == "__main__":
    B, L, D, H = 2, 8, 32, 4

    root = jax.random.PRNGKey(0)
    kq, kk, kv, kp = jax.random.split(root, 4)
    query = jax.random.normal(kq, (B, L, D), jnp.float32)
    key = jax.random.normal(kk, (B, L, D), jnp.float32)
    value = jax.random.normal(kv, (B, L, D), jnp.float32)

    pkeys = jax.random.split(kp, 4)
    wq, bq = _init_linear(pkeys[0], D, D)
    wk, bk = _init_linear(pkeys[1], D, D)
    wv, bv = _init_linear(pkeys[2], D, D)
    wo, bo = _init_linear(pkeys[3], D, D)
    params = (wq, bq, wk, bk, wv, bv, wo, bo)

    out, attn = multi_head_attention(query, key, value, params, num_heads=H,
                                     compute_dtype=jnp.float32,
                                     attn_dtype=jnp.float32)
    out = jax.block_until_ready(out)
    attn = jax.block_until_ready(attn)

    ref_out, ref_attn = _reference(query, key, value, params, H)
    assert out.shape == (B, L, D) and attn.shape == (B, H, L, L)
    assert jnp.allclose(out, ref_out, atol=1e-4, rtol=1e-4)
    assert jnp.allclose(attn, ref_attn, atol=1e-4, rtol=1e-4)

    print("KERNEL_OK")
</pallas_src>

<mosaic_0001>
module attributes {stable_mosaic.version = 11 : i64} {
  func.func @_linear_kernel(%arg0: i32, %arg1: i32, %arg2: memref<16x32xf32, #tpu.memory_space<vmem>>, %arg3: memref<32x32xf32, #tpu.memory_space<vmem>>, %arg4: memref<1x32xf32, #tpu.memory_space<vmem>>, %arg5: memref<16x32xf32, #tpu.memory_space<vmem>>) attributes {dimension_semantics = [#tpu.dimension_semantics<parallel>, #tpu.dimension_semantics<parallel>], iteration_bounds = array<i64: 1, 1>, scalar_prefetch = 0 : i64, scratch_operands = 0 : i64, tpu.core_type = #tpu.core_type<tc>, window_params = [{transform_indices = @transform_0, window_bounds = array<i64: 16, 32>}, {transform_indices = @transform_1, window_bounds = array<i64: 32, 32>}, {transform_indices = @transform_2, window_bounds = array<i64: 1, 32>}, {transform_indices = @transform_3, window_bounds = array<i64: 16, 32>}]} {
    %c0 = arith.constant 0 : index
    %c0_0 = arith.constant 0 : index
    %0 = vector.load %arg2[%c0, %c0_0] : memref<16x32xf32, #tpu.memory_space<vmem>>, vector<16x32xf32>
    %c0_1 = arith.constant 0 : index
    %c0_2 = arith.constant 0 : index
    %1 = vector.load %arg3[%c0_1, %c0_2] : memref<32x32xf32, #tpu.memory_space<vmem>>, vector<32x32xf32>
    %cst = arith.constant dense<0.000000e+00> : vector<16x32xf32>
    %2 = tpu.matmul %0, %1, %cst {dimension_numbers = #tpu.dot_dimension_numbers<[1], [0], [0], [1], [0, 0, 1, 1], [], []>} : vector<16x32xf32>, vector<32x32xf32>, vector<16x32xf32> -> vector<16x32xf32>
    %c0_3 = arith.constant 0 : index
    %c0_4 = arith.constant 0 : index
    %3 = vector.load %arg4[%c0_3, %c0_4] : memref<1x32xf32, #tpu.memory_space<vmem>>, vector<1x32xf32>
    %4 = vector.broadcast %3 : vector<1x32xf32> to vector<16x32xf32>
    %5 = arith.addf %2, %4 : vector<16x32xf32>
    %c0_5 = arith.constant 0 : index
    %c0_6 = arith.constant 0 : index
    %6 = vector.load %arg5[%c0_5, %c0_6] : memref<16x32xf32, #tpu.memory_space<vmem>>, vector<16x32xf32>
    tpu.vector_store %arg5[%c0_5, %c0_6], %5 {strides = array<i32>} : memref<16x32xf32, #tpu.memory_space<vmem>>, vector<16x32xf32>,
    return
  }
  func.func @transform_0(%arg0: i32, %arg1: i32) -> (i32, i32) {
    %c0_i32 = arith.constant 0 : i32
    %c0_i32_0 = arith.constant 0 : i32
    return %arg0, %c0_i32 : i32, i32
  }
  func.func @transform_1(%arg0: i32, %arg1: i32) -> (i32, i32) {
    %c0_i32 = arith.constant 0 : i32
    %c0_i32_0 = arith.constant 0 : i32
    return %c0_i32, %arg1 : i32, i32
  }
  func.func @transform_2(%arg0: i32, %arg1: i32) -> (i32, i32) {
    %c0_i32 = arith.constant 0 : i32
    %c0_i32_0 = arith.constant 0 : i32
    return %c0_i32, %arg1 : i32, i32
  }
  func.func @transform_3(%arg0: i32, %arg1: i32) -> (i32, i32) {
    %c0_i32 = arith.constant 0 : i32
    return %arg0, %arg1 : i32, i32
  }
}

</mosaic_0001>

<llo_original>
// kernel: tpu_custom_call.1
$region0: #{tpu_custom_call.1}
  #allocation0 [shape = 'u32[]', space=smem, size = 0x4, offset = 0x4, fixed_abs, tag = 'smem constant byte address 0x4 - core index']
  #allocation1 [shape = 'u32[144,128]{1,0:T(1,128)}', space=vmem, size = 0x12000, scoped, tag = 'internal scratch']
  %s0 = inlined_call_operand.hbm [shape: f32[16,32], index: 0, kind: input, shape index: {}]
  %s1 = inlined_call_operand.hbm [shape: f32[32,32], index: 1, kind: input, shape index: {}]
  %s2 = inlined_call_operand.vmem [shape: f32[1,32], index: 2, kind: input, shape index: {}]
  %s3 = inlined_call_operand.hbm [shape: f32[16,32], index: 3, kind: output, shape index: {}]
  %s4 = sld [smem:[#allocation0]]
  $region30: #{tpu_custom_call.1} parent=0
    _
  %s6 = ssub.s32 1, %s4
  %s7 = scalar_select 0, %s6, %s4
  $region1: #{tpu_custom_call.1} parent=0
    #allocation2 [shape = 'u8[8192]{0}', space=vmem, size = 0x2000, scoped, tag = 'input window, operand 0, single buffered']
    #allocation3 [shape = 's32[1]{0}', space=sflag, size = 0x4, scoped, tag = 'scoped memory for tpu_custom_call.1']
    #allocation4 [shape = 's32[1]{0}', space=sflag, size = 0x4, scoped, tag = 'scoped memory for tpu_custom_call.1']
    #allocation5 [shape = 'u8[16384]{0}', space=vmem, size = 0x4000, scoped, tag = 'input window, operand 1, single buffered']
    #allocation6 [shape = 's32[1]{0}', space=sflag, size = 0x4, scoped, tag = 'scoped memory for tpu_custom_call.1']
    #allocation7 [shape = 'u8[8192]{0}', space=vmem, size = 0x2000, scoped, tag = 'output window, operand 0, single buffered']
    %8 = vsyncpa [#allocation3], 0
    %9 = vsyncpa [#allocation6], 0
    %10 = vsyncpa [#allocation4], 0
    // Predicated region
    $region2: #{tpu_custom_call.1} parent=1 // pred_check
      _
    $region3: #{tpu_custom_call.1} parent=1 // pred_check_branch
      %12 = sbr.rel (0) target = $region5
    $region4: #{tpu_custom_call.1} parent=1 // pred_region
      %s14 = ssub.s32 256, 256
      %15 = vsyncadd [#allocation3], %s14
      %s16 = sshll.u32 [#allocation2], 4
      %s17 = int_to_ptr.vmem [resolvable:$true] %s16
      %22 = dma.hbm_to_vmem [thread:$0]  %s0, 256, %s17, [#allocation3], 128, 128, 8
    $region5: #{tpu_custom_call.1} parent=1 // pred_fallthru
      _
    // Predicated region
    $region6: #{tpu_custom_call.1} parent=1 // pred_check
      _
    $region7: #{tpu_custom_call.1} parent=1 // pred_check_branch
      %24 = sbr.rel (0) target = $region9
    $region8: #{tpu_custom_call.1} parent=1 // pred_region
      %s26 = ssub.s32 512, 512
      %27 = vsyncadd [#allocation6], %s26
      %s28 = sshll.u32 [#allocation5], 4
      %s29 = int_to_ptr.vmem [resolvable:$true] %s28
      %34 = dma.hbm_to_vmem [thread:$0]  %s1, 512, %s29, [#allocation6], 128, 128, 8
    $region9: #{tpu_custom_call.1} parent=1 // pred_fallthru
      _
    // Predicated region
    $region10: #{tpu_custom_call.1} parent=1 // pred_check
      _
    $region11: #{tpu_custom_call.1} parent=1 // pred_check_branch
      %36 = sbr.rel (0) target = $region13
    $region12: #{tpu_custom_call.1} parent=1 // pred_region
      _
    $region13: #{tpu_custom_call.1} parent=1 // pred_fallthru
      _
    // Predicated region
    $region14: #{tpu_custom_call.1} parent=1 // pred_check
      _
    $region15: #{tpu_custom_call.1} parent=1 // pred_check_branch
      %38 = sbr.rel (0) target = $region17
    $region16: #{tpu_custom_call.1} parent=1 // pred_region
      %39 = dma.done [#allocation3], 256
    $region17: #{tpu_custom_call.1} parent=1 // pred_fallthru
      _
    // Predicated region
    $region18: #{tpu_custom_call.1} parent=1 // pred_check
      _
    $region19: #{tpu_custom_call.1} parent=1 // pred_check_branch
      %41 = sbr.rel (0) target = $region21
    $region20: #{tpu_custom_call.1} parent=1 // pred_region
      %42 = dma.done [#allocation6], 512
    $region21: #{tpu_custom_call.1} parent=1 // pred_fallthru
      _
    %v43 = vld [vmem:[#allocation2] sm:$0xff]
    %v44 = vld [vmem:[#allocation2 + $0x8] sm:$0xff]
    %v45 = vld [vmem:[#allocation5] sm:$0xff]
    %v46 = vld [vmem:[#allocation5 + $0x8] sm:$0xff]
    %v47 = vld [vmem:[#allocation5 + $0x10] sm:$0xff]
    %v48 = vld [vmem:[#allocation5 + $0x18] sm:$0xff]
    %v49 = vld [vmem:[%s2] sm:$0x1]
    %v51 = vlaneseq
    %v52 = vshrl.u32 %v51, 7
    %v53 = vsub.s32 0, %v52
    %v54 = vrot.slane %v49, %v53
    %vm56 = vcmask 261120
    %v58 = vsel %vm56, %v43, 0
    %v61 = vsel %vm56, %v44, 0
    %63 = vmatprep.subr.mxu0 0.0
    %64 = vmatpush1.msra.mxu0 0.0
    %65 = vmatprep.subr.mxu0 0.0
    %66 = vmatpush1.msra.mxu0 0.0
    %67 = vmatprep.subr.mxu0 0.0
    %68 = vmatpush1.msra.mxu0 0.0
    %69 = vmatprep.subr.mxu0 0.0
    %70 = vmatpush1.msra.mxu0 0.0
    %71 = vmatprep.subr.mxu0 0.0
    %72 = vmatpush1.msra.mxu0 0.0
    %73 = vmatprep.subr.mxu0 0.0
    %74 = vmatpush1.msra.mxu0 0.0
    %75 = vmatprep.subr.mxu0 0.0
    %76 = vmatpush1.msra.mxu0 0.0
    %77 = vmatprep.subr.mxu0 0.0
    %78 = vmatpush1.msra.mxu0 0.0
    %79 = vmatprep.subr.mxu0 0.0
    %80 = vmatpush1.msra.mxu0 0.0
    %81 = vmatprep.subr.mxu0 0.0
    %82 = vmatpush1.msra.mxu0 0.0
    %83 = vmatprep.subr.mxu0 0.0
    %84 = vmatpush1.msra.mxu0 0.0
    %85 = vmatprep.subr.mxu0 0.0
    %86 = vmatpush1.msra.mxu0 0.0
    %87 = vmatprep.subr.mxu0 0.0
    %88 = vmatpush1.msra.mxu0 %v48
    %89 = vmatprep.subr.mxu0 0.0
    %90 = vmatpush1.msra.mxu0 %v47
    %91 = vmatprep.subr.mxu0 0.0
    %92 = vmatpush1.msra.mxu0 %v46
    %93 = vmatprep.subr.mxu0 0.0
    %94 = vmatpush1.msra.mxu0 %v45
    %95 = vmatprep.subr.mxu0 0.0
    %96 = vmatpush2.msra.mxu0 0.0
    %97 = vmatprep.subr.mxu0 0.0
    %98 = vmatpush2.msra.mxu0 0.0
    %99 = vmatprep.subr.mxu0 0.0
    %100 = vmatpush2.msra.mxu0 0.0
    %101 = vmatprep.subr.mxu0 0.0
    %102 = vmatpush2.msra.mxu0 0.0
    %103 = vmatprep.subr.mxu0 0.0
    %104 = vmatpush2.msra.mxu0 0.0
    %105 = vmatprep.subr.mxu0 0.0
    %106 = vmatpush2.msra.mxu0 0.0
    %107 = vmatprep.subr.mxu0 0.0
    %108 = vmatpush2.msra.mxu0 0.0
    %109 = vmatprep.subr.mxu0 0.0
    %110 = vmatpush2.msra.mxu0 0.0
    %111 = vmatprep.subr.mxu0 0.0
    %112 = vmatpush2.msra.mxu0 0.0
    %113 = vmatprep.subr.mxu0 0.0
    %114 = vmatpush2.msra.mxu0 0.0
    %115 = vmatprep.subr.mxu0 0.0
    %116 = vmatpush2.msra.mxu0 0.0
    %117 = vmatprep.subr.mxu0 0.0
    %118 = vmatpush2.msra.mxu0 0.0
    %119 = vmatprep.subr.mxu0 0.0
    %120 = vmatpush2.msra.mxu0 0.0
    %121 = vmatprep.subr.mxu0 0.0
    %122 = vmatpush2.msra.mxu0 0.0
    %123 = vmatprep.subr.mxu0 0.0
    %124 = vmatpush2.msra.mxu0 0.0
    %125 = vmatprep.subr.mxu0 0.0
    %126 = vmatpush2.msra.mxu0 0.0
    %127 = vmatprep.mubr.f32.mxu0 0.0
    %128 = vmatmul.mubr.f32.gmra.mxu0 %v58
    %v129 = vpop.f32.mrf.mxu0
    %v130 = vadd.f32 %v54, %v129
    %v131 = vpop.f32.mrf.mxu0
    %132 = vmatprep.mubr.f32.mxu0 0.0
    %133 = vmatmul.mubr.f32.gmra.mxu0 %v61
    %v134 = vpop.f32.mrf.mxu0
    %v135 = vadd.f32 %v54, %v134
    %v136 = vpop.f32.mrf.mxu0
    %137 = vdwg.mxu0
    %138 = vst.msk [vmem:[#allocation7] sm:$0xff] %vm56, %v130
    %139 = vst.msk [vmem:[#allocation7 + $0x8] sm:$0xff] %vm56, %v135
    // Predicated region
    $region22: #{tpu_custom_call.1} parent=1 // pred_check
      _
    $region23: #{tpu_custom_call.1} parent=1 // pred_check_branch
      %141 = sbr.rel (0) target = $region25
    $region24: #{tpu_custom_call.1} parent=1 // pred_region
      %s143 = ssub.s32 256, 256
      %144 = vsyncadd [#allocation4], %s143
      %s145 = sshll.u32 [#allocation7], 4
      %s146 = int_to_ptr.vmem [resolvable:$true] %s145
      %151 = dma.vmem_to_hbm [thread:$0]  %s146, 256, %s3, [#allocation4], 128, 128, 8
    $region25: #{tpu_custom_call.1} parent=1 // pred_fallthru
      _
    // Predicated region
    $region26: #{tpu_custom_call.1} parent=1 // pred_check
      _
    $region27: #{tpu_custom_call.1} parent=1 // pred_check_branch
      %153 = sbr.rel (0) target = $region29
    $region28: #{tpu_custom_call.1} parent=1 // pred_region
      %154 = dma.done [#allocation4], 256
    $region29: #{tpu_custom_call.1} parent=1 // pred_fallthru
      _
    %155 = vsyncpa [#allocation3], 1
    %156 = vsyncpa [#allocation6], 1
    %157 = vsyncpa [#allocation4], 1

</llo_original>
